<compile_context>
chip_gen: v7x
topology: tpu7x:2x2x1
jax: 0.10.0
libtpu: 0.0.40
codegen_flags: <defaults>
</compile_context>

<pallas_src>
import functools

import jax
import jax.numpy as jnp
from jax.experimental import pallas as pl
from jax.experimental.pallas import tpu as pltpu


def _round_up(v, m):
    return ((v + m - 1) // m) * m


def _seqwise_kernel_single_k(x_ref, w_ref, b_ref, o_ref):
    # Whole K reduction fits in one tile: no scratch, no conditionals.
    # x_ref: (bm, K) bf16, w_ref: (K, bn) bf16, b_ref: (1, bn) f32.
    o_ref[...] = (
        jnp.dot(x_ref[...], w_ref[...], preferred_element_type=jnp.float32)
        + b_ref[...]
    ).astype(o_ref.dtype)


def _seqwise_kernel_multi_k(x_ref, w_ref, b_ref, o_ref, acc_ref):
    # x_ref: (bm, bk) bf16, w_ref: (bk, bn) bf16, b_ref: (1, bn) f32,
    # o_ref: (bm, bn) out dtype, acc_ref: (bm, bn) f32 scratch.
    k = pl.program_id(2)

    @pl.when(k == 0)
    def _init():
        acc_ref[...] = jnp.zeros_like(acc_ref)

    acc_ref[...] += jnp.dot(
        x_ref[...], w_ref[...], preferred_element_type=jnp.float32
    )

    @pl.when(k == pl.num_programs(2) - 1)
    def _finalize():
        # Bias added exactly once per output tile, in f32, then cast out.
        o_ref[...] = (acc_ref[...] + b_ref[...]).astype(o_ref.dtype)


@functools.partial(jax.jit, static_argnames=("bm", "bn", "bk"))
def sequence_wise_linear(x, weight, bias, *, bm=256, bn=256, bk=1024):
    """SequenceWise(Linear(H, H_out)): x (T, N, H) -> (T, N, H_out)."""
    t, n, h = x.shape
    h_out = weight.shape[1]
    rows = t * n
    out_dtype = x.dtype

    # Clamp tiles to the (128-rounded) problem; keep 128-alignment so output
    # stores are lane-dense and K/N tiles are MXU-friendly.
    bm = min(bm, _round_up(rows, 128))
    bn = min(bn, _round_up(h_out, 128))
    bk = min(bk, _round_up(h, 128))

    rows_p = _round_up(rows, bm)
    hout_p = _round_up(h_out, bn)
    h_p = _round_up(h, bk)

    # Glue (outside the kernel): flatten (T,N,H) -> (T*N,H) exactly like
    # x.view(t*n, -1), zero-pad to the tile grid, and feed the MXU in bf16.
    x_flat = x.reshape(rows, h)
    x_p = jnp.pad(x_flat, ((0, rows_p - rows), (0, h_p - h))).astype(jnp.bfloat16)
    w_p = jnp.pad(weight, ((0, h_p - h), (0, hout_p - h_out))).astype(jnp.bfloat16)
    b_p = jnp.pad(bias, (0, hout_p - h_out)).astype(jnp.float32).reshape(1, hout_p)

    n_k = h_p // bk

    cost = pl.CostEstimate(
        flops=2 * rows_p * h_p * hout_p,
        bytes_accessed=(
            rows_p * h_p * 2                                   # x (bf16)
            + h_p * hout_p * 2                                 # weight (bf16)
            + hout_p * 4                                       # bias (f32)
            + rows_p * hout_p * jnp.dtype(out_dtype).itemsize  # output
        ),
        transcendentals=0,
    )

    if n_k == 1:
        # Fast path: single K tile -> fused matmul + bias + cast, no scratch.
        kernel = _seqwise_kernel_single_k
        grid_spec = pltpu.PrefetchScalarGridSpec(
            num_scalar_prefetch=0,
            grid=(rows_p // bm, hout_p // bn),
            in_specs=[
                pl.BlockSpec((bm, bk), lambda i, j: (i, 0)),
                pl.BlockSpec((bk, bn), lambda i, j: (0, j)),
                pl.BlockSpec((1, bn), lambda i, j: (0, j)),
            ],
            out_specs=pl.BlockSpec((bm, bn), lambda i, j: (i, j)),
        )
        dims = ("parallel", "parallel")
    else:
        # General path: K-tiled reduction with a resident f32 accumulator.
        kernel = _seqwise_kernel_multi_k
        grid_spec = pltpu.PrefetchScalarGridSpec(
            num_scalar_prefetch=0,
            grid=(rows_p // bm, hout_p // bn, n_k),
            in_specs=[
                # x: the large streaming operand, tiled over (rows, K).
                pl.BlockSpec((bm, bk), lambda i, j, k: (i, k)),
                # weight: (bk, bn) tile indexed by (K tile, out-col tile).
                pl.BlockSpec((bk, bn), lambda i, j, k: (k, j)),
                # bias: (1, bn) tile indexed by the output-column tile only.
                pl.BlockSpec((1, bn), lambda i, j, k: (0, j)),
            ],
            out_specs=pl.BlockSpec((bm, bn), lambda i, j, k: (i, j)),
            scratch_shapes=[pltpu.VMEM((bm, bn), jnp.float32)],
        )
        dims = ("parallel", "parallel", "arbitrary")

    out_p = pl.pallas_call(
        kernel,
        out_shape=jax.ShapeDtypeStruct((rows_p, hout_p), out_dtype),
        grid_spec=grid_spec,
        compiler_params=pltpu.CompilerParams(
            dimension_semantics=dims,
            vmem_limit_bytes=32 * 1024 * 1024,
        ),
        cost_estimate=cost,
    )(x_p, w_p, b_p)

    # Glue: drop padding and restore (T, N, H_out), like x.view(t, n, -1).
    return out_p[:rows, :h_out].reshape(t, n, h_out)


if __name__ == "__main__":
    # Small shapes consistent with the (T, N, H) convention of SequenceWise.
    T, N, H, H_OUT = 8, 2, 32, 32

    key = jax.random.PRNGKey(0)
    kx, kw, kb = jax.random.split(key, 3)

    x = jax.random.normal(kx, (T, N, H), dtype=jnp.float32)

    # Deterministic nn.Linear-style init: U(-1/sqrt(H), 1/sqrt(H)).
    bound = 1.0 / (H ** 0.5)
    weight = jax.random.uniform(kw, (H, H_OUT), jnp.float32, -bound, bound)
    bias = jax.random.uniform(kb, (H_OUT,), jnp.float32, -bound, bound)

    out = sequence_wise_linear(x, weight, bias)
    out = jax.block_until_ready(out)
    assert out.shape == (T, N, H_OUT)

    # Reference with the same bf16-in / f32-accumulate numerics as the kernel.
    x_bf = x.reshape(T * N, H).astype(jnp.bfloat16)
    w_bf = weight.astype(jnp.bfloat16)
    ref_bf = (
        jnp.dot(x_bf, w_bf, preferred_element_type=jnp.float32) + bias
    ).astype(x.dtype).reshape(T, N, H_OUT)
    assert jnp.allclose(out, ref_bf, atol=2e-2, rtol=2e-2), float(
        jnp.max(jnp.abs(out - ref_bf))
    )

    # Looser check against the full-f32 SequenceWise(Linear) semantics.
    ref_f32 = (x.reshape(T * N, H) @ weight + bias).reshape(T, N, H_OUT)
    assert jnp.allclose(out, ref_f32, atol=5e-2, rtol=5e-2), float(
        jnp.max(jnp.abs(out - ref_f32))
    )

    print("KERNEL_OK")
</pallas_src>

<mosaic_0001>
module attributes {stable_mosaic.version = 11 : i64} {
  func.func @_seqwise_kernel_single_k(%arg0: i32, %arg1: i32, %arg2: memref<128x128xbf16, #tpu.memory_space<vmem>>, %arg3: memref<128x128xbf16, #tpu.memory_space<vmem>>, %arg4: memref<1x128xf32, #tpu.memory_space<vmem>>, %arg5: memref<128x128xf32, #tpu.memory_space<vmem>>) attributes {dimension_semantics = [#tpu.dimension_semantics<parallel>, #tpu.dimension_semantics<parallel>], iteration_bounds = array<i64: 1, 1>, scalar_prefetch = 0 : i64, scratch_operands = 0 : i64, tpu.core_type = #tpu.core_type<tc>, window_params = [{transform_indices = @transform_0, window_bounds = array<i64: 128, 128>}, {transform_indices = @transform_1, window_bounds = array<i64: 128, 128>}, {transform_indices = @transform_2, window_bounds = array<i64: 1, 128>}, {transform_indices = @transform_3, window_bounds = array<i64: 128, 128>}]} {
    %c0 = arith.constant 0 : index
    %c0_0 = arith.constant 0 : index
    %0 = vector.load %arg2[%c0, %c0_0] : memref<128x128xbf16, #tpu.memory_space<vmem>>, vector<128x128xbf16>
    %c0_1 = arith.constant 0 : index
    %c0_2 = arith.constant 0 : index
    %1 = vector.load %arg3[%c0_1, %c0_2] : memref<128x128xbf16, #tpu.memory_space<vmem>>, vector<128x128xbf16>
    %cst = arith.constant dense<0.000000e+00> : vector<128x128xf32>
    %2 = tpu.matmul %0, %1, %cst {dimension_numbers = #tpu.dot_dimension_numbers<[1], [0], [0], [1], [0, 0, 1, 1], [], []>} : vector<128x128xbf16>, vector<128x128xbf16>, vector<128x128xf32> -> vector<128x128xf32>
    %c0_3 = arith.constant 0 : index
    %c0_4 = arith.constant 0 : index
    %3 = vector.load %arg4[%c0_3, %c0_4] : memref<1x128xf32, #tpu.memory_space<vmem>>, vector<1x128xf32>
    %4 = vector.broadcast %3 : vector<1x128xf32> to vector<128x128xf32>
    %5 = arith.addf %2, %4 : vector<128x128xf32>
    %c0_5 = arith.constant 0 : index
    %c0_6 = arith.constant 0 : index
    %6 = vector.load %arg5[%c0_5, %c0_6] : memref<128x128xf32, #tpu.memory_space<vmem>>, vector<128x128xf32>
    tpu.vector_store %arg5[%c0_5, %c0_6], %5 {strides = array<i32>} : memref<128x128xf32, #tpu.memory_space<vmem>>, vector<128x128xf32>,
    return
  }
  func.func @transform_0(%arg0: i32, %arg1: i32) -> (i32, i32) {
    %c0_i32 = arith.constant 0 : i32
    %c0_i32_0 = arith.constant 0 : i32
    return %arg0, %c0_i32 : i32, i32
  }
  func.func @transform_1(%arg0: i32, %arg1: i32) -> (i32, i32) {
    %c0_i32 = arith.constant 0 : i32
    %c0_i32_0 = arith.constant 0 : i32
    return %c0_i32, %arg1 : i32, i32
  }
  func.func @transform_2(%arg0: i32, %arg1: i32) -> (i32, i32) {
    %c0_i32 = arith.constant 0 : i32
    %c0_i32_0 = arith.constant 0 : i32
    return %c0_i32, %arg1 : i32, i32
  }
  func.func @transform_3(%arg0: i32, %arg1: i32) -> (i32, i32) {
    %c0_i32 = arith.constant 0 : i32
    return %arg0, %arg1 : i32, i32
  }
}

</mosaic_0001>

<llo_original>
// kernel: sequence_wise_linear.1
$region0: #{sequence_wise_linear.1}
  #allocation0 [shape = 'u32[]', space=smem, size = 0x4, offset = 0x4, fixed_abs, tag = 'smem constant byte address 0x4 - core index']
  #allocation1 [shape = 'u32[144,128]{1,0:T(1,128)}', space=vmem, size = 0x12000, scoped, tag = 'internal scratch']
  %s0 = inlined_call_operand.vmem [shape: bf16[128,128], index: 0, kind: input, shape index: {}]
  %s1 = inlined_call_operand.vmem [shape: bf16[128,128], index: 1, kind: input, shape index: {}]
  %s2 = inlined_call_operand.vmem [shape: f32[1,128], index: 2, kind: input, shape index: {}]
  %s3 = inlined_call_operand.vmem [shape: f32[128,128], index: 3, kind: output, shape index: {}]
  %s4 = sld [smem:[#allocation0]]
  $region22: #{sequence_wise_linear.1} parent=0
    _
  %s6 = ssub.s32 1, %s4
  %s7 = scalar_select 0, %s6, %s4
  // Predicated region
  $region2: #{sequence_wise_linear.1} parent=0 // pred_check
    _
  $region3: #{sequence_wise_linear.1} parent=0 // pred_check_branch
    %9 = sbr.rel (0) target = $region5
  $region4: #{sequence_wise_linear.1} parent=0 // pred_region
    _
  $region5: #{sequence_wise_linear.1} parent=0 // pred_fallthru
    _
  // Predicated region
  $region6: #{sequence_wise_linear.1} parent=0 // pred_check
    _
  $region7: #{sequence_wise_linear.1} parent=0 // pred_check_branch
    %11 = sbr.rel (0) target = $region9
  $region8: #{sequence_wise_linear.1} parent=0 // pred_region
    _
  $region9: #{sequence_wise_linear.1} parent=0 // pred_fallthru
    _
  // Predicated region
  $region10: #{sequence_wise_linear.1} parent=0 // pred_check
    _
  $region11: #{sequence_wise_linear.1} parent=0 // pred_check_branch
    %13 = sbr.rel (0) target = $region13
  $region12: #{sequence_wise_linear.1} parent=0 // pred_region
    _
  $region13: #{sequence_wise_linear.1} parent=0 // pred_fallthru
    _
  %v15 = vld [vmem:[%s0] sm:$0xf]
  %v16 = vld [vmem:[%s0 + $0x4] sm:$0xf]
  %v17 = vld [vmem:[%s0 + $0x8] sm:$0xf]
  %v18 = vld [vmem:[%s0 + $0xc] sm:$0xf]
  %v19 = vld [vmem:[%s0 + $0x10] sm:$0xf]
  %v20 = vld [vmem:[%s0 + $0x14] sm:$0xf]
  %v21 = vld [vmem:[%s0 + $0x18] sm:$0xf]
  %v22 = vld [vmem:[%s0 + $0x1c] sm:$0xf]
  %v23 = vld [vmem:[%s0 + $0x20] sm:$0xf]
  %v24 = vld [vmem:[%s0 + $0x24] sm:$0xf]
  %v25 = vld [vmem:[%s0 + $0x28] sm:$0xf]
  %v26 = vld [vmem:[%s0 + $0x2c] sm:$0xf]
  %v27 = vld [vmem:[%s0 + $0x30] sm:$0xf]
  %v28 = vld [vmem:[%s0 + $0x34] sm:$0xf]
  %v29 = vld [vmem:[%s0 + $0x38] sm:$0xf]
  %v30 = vld [vmem:[%s0 + $0x3c] sm:$0xf]
  %v31 = vld [vmem:[%s1] sm:$0xf]
  %v32 = vld [vmem:[%s1 + $0x4] sm:$0xf]
  %v33 = vld [vmem:[%s1 + $0x8] sm:$0xf]
  %v34 = vld [vmem:[%s1 + $0xc] sm:$0xf]
  %v35 = vld [vmem:[%s1 + $0x10] sm:$0xf]
  %v36 = vld [vmem:[%s1 + $0x14] sm:$0xf]
  %v37 = vld [vmem:[%s1 + $0x18] sm:$0xf]
  %v38 = vld [vmem:[%s1 + $0x1c] sm:$0xf]
  %v39 = vld [vmem:[%s1 + $0x20] sm:$0xf]
  %v40 = vld [vmem:[%s1 + $0x24] sm:$0xf]
  %v41 = vld [vmem:[%s1 + $0x28] sm:$0xf]
  %v42 = vld [vmem:[%s1 + $0x2c] sm:$0xf]
  %v43 = vld [vmem:[%s1 + $0x30] sm:$0xf]
  %v44 = vld [vmem:[%s1 + $0x34] sm:$0xf]
  %v45 = vld [vmem:[%s1 + $0x38] sm:$0xf]
  %v46 = vld [vmem:[%s1 + $0x3c] sm:$0xf]
  %v47 = vld [vmem:[%s2] sm:$0x1]
  %v49 = vlaneseq
  %v50 = vshrl.u32 %v49, 7
  %v51 = vsub.s32 0, %v50
  %v52 = vrot.slane %v47, %v51
  %v70 = vunpack.c.l.b16 %v15
  %v71 = vunpack.c.l.b16 %v16
  %v72 = vunpack.c.l.b16 %v17
  %v73 = vunpack.c.l.b16 %v18
  %v74 = vunpack.c.l.b16 %v19
  %v75 = vunpack.c.l.b16 %v20
  %v76 = vunpack.c.l.b16 %v21
  %v77 = vunpack.c.l.b16 %v22
  %v78 = vunpack.c.l.b16 %v23
  %v79 = vunpack.c.l.b16 %v24
  %v80 = vunpack.c.l.b16 %v25
  %v81 = vunpack.c.l.b16 %v26
  %v82 = vunpack.c.l.b16 %v27
  %v83 = vunpack.c.l.b16 %v28
  %v84 = vunpack.c.l.b16 %v29
  %v85 = vunpack.c.l.b16 %v30
  %v86 = vpack.c.b16 %v71, %v70
  %v87 = vpack.c.b16 %v73, %v72
  %v88 = vpack.c.b16 %v75, %v74
  %v89 = vpack.c.b16 %v77, %v76
  %v90 = vpack.c.b16 %v79, %v78
  %v91 = vpack.c.b16 %v81, %v80
  %v92 = vpack.c.b16 %v83, %v82
  %v93 = vpack.c.b16 %v85, %v84
  %v118 = vunpack.c.l.b16 %v31
  %v119 = vunpack.c.l.b16 %v32
  %v120 = vunpack.c.l.b16 %v33
  %v121 = vunpack.c.l.b16 %v34
  %v122 = vunpack.c.l.b16 %v35
  %v123 = vunpack.c.l.b16 %v36
  %v124 = vunpack.c.l.b16 %v37
  %v125 = vunpack.c.l.b16 %v38
  %v126 = vunpack.c.l.b16 %v39
  %v127 = vunpack.c.l.b16 %v40
  %v128 = vunpack.c.l.b16 %v41
  %v129 = vunpack.c.l.b16 %v42
  %v130 = vunpack.c.l.b16 %v43
  %v131 = vunpack.c.l.b16 %v44
  %v132 = vunpack.c.l.b16 %v45
  %v133 = vunpack.c.l.b16 %v46
  %v134 = vpack.c.b16 %v119, %v118
  %v135 = vpack.c.b16 %v121, %v120
  %v136 = vpack.c.b16 %v123, %v122
  %v137 = vpack.c.b16 %v125, %v124
  %v138 = vpack.c.b16 %v127, %v126
  %v139 = vpack.c.b16 %v129, %v128
  %v140 = vpack.c.b16 %v131, %v130
  %v141 = vpack.c.b16 %v133, %v132
  %150 = vmatprep.subr.bf16.mxu0 0
  %151 = vmatpush1.bf16.msra.mxu0 %v134
  %152 = vmatprep.subr.bf16.mxu0 0
  %153 = vmatpush1.bf16.msra.mxu0 %v135
  %154 = vmatprep.subr.bf16.mxu0 0
  %155 = vmatpush1.bf16.msra.mxu0 %v136
  %156 = vmatprep.subr.bf16.mxu0 0
  %157 = vmatpush1.bf16.msra.mxu0 %v137
  %158 = vmatprep.subr.bf16.mxu0 0
  %159 = vmatpush1.bf16.msra.mxu0 %v138
  %160 = vmatprep.subr.bf16.mxu0 0
  %161 = vmatpush1.bf16.msra.mxu0 %v139
  %162 = vmatprep.subr.bf16.mxu0 0
  %163 = vmatpush1.bf16.msra.mxu0 %v140
  %164 = vmatprep.subr.bf16.mxu0 0
  %165 = vmatpush1.bf16.msra.mxu0 %v141
  %166 = vmatprep.subr.bf16.mxu0 0
  %167 = vmatpush1.bf16.msra.mxu0 0
  %168 = vmatprep.subr.bf16.mxu0 0
  %169 = vmatpush1.bf16.msra.mxu0 0
  %170 = vmatprep.subr.bf16.mxu0 0
  %171 = vmatpush1.bf16.msra.mxu0 0
  %172 = vmatprep.subr.bf16.mxu0 0
  %173 = vmatpush1.bf16.msra.mxu0 0
  %174 = vmatprep.subr.bf16.mxu0 0
  %175 = vmatpush1.bf16.msra.mxu0 0
  %176 = vmatprep.subr.bf16.mxu0 0
  %177 = vmatpush1.bf16.msra.mxu0 0
  %178 = vmatprep.subr.bf16.mxu0 0
  %179 = vmatpush1.bf16.msra.mxu0 0
  %180 = vmatprep.subr.bf16.mxu0 0
  %181 = vmatpush1.bf16.msra.mxu0 0
  %182 = vmatprep.mubr.bf16.mxu0 0
  %183 = vmatmul.mubr.bf16.gmra.mrb[0].mxu0 %v86
  %v184 = vpop.f32.mrb[0].mxu0
  %v185 = vadd.f32 %v52, %v184
  %v186 = vpop.f32.mrb[0].mxu0
  %v187 = vpop.f32.mrb[0].mxu0
  %v188 = vadd.f32 %v52, %v187
  %v189 = vpop.f32.mrb[0].mxu0
  %190 = vmatprep.mubr.bf16.mxu0 0
  %191 = vmatmul.mubr.bf16.gmra.mrb[0].mxu0 %v87
  %v192 = vpop.f32.mrb[0].mxu0
  %v193 = vadd.f32 %v52, %v192
  %v194 = vpop.f32.mrb[0].mxu0
  %v195 = vpop.f32.mrb[0].mxu0
  %v196 = vadd.f32 %v52, %v195
  %v197 = vpop.f32.mrb[0].mxu0
  %198 = vmatprep.mubr.bf16.mxu0 0
  %199 = vmatmul.mubr.bf16.gmra.mrb[0].mxu0 %v88
  %v200 = vpop.f32.mrb[0].mxu0
  %v201 = vadd.f32 %v52, %v200
  %v202 = vpop.f32.mrb[0].mxu0
  %v203 = vpop.f32.mrb[0].mxu0
  %v204 = vadd.f32 %v52, %v203
  %v205 = vpop.f32.mrb[0].mxu0
  %206 = vmatprep.mubr.bf16.mxu0 0
  %207 = vmatmul.mubr.bf16.gmra.mrb[0].mxu0 %v89
  %v208 = vpop.f32.mrb[0].mxu0
  %v209 = vadd.f32 %v52, %v208
  %v210 = vpop.f32.mrb[0].mxu0
  %v211 = vpop.f32.mrb[0].mxu0
  %v212 = vadd.f32 %v52, %v211
  %v213 = vpop.f32.mrb[0].mxu0
  %214 = vmatprep.mubr.bf16.mxu0 0
  %215 = vmatmul.mubr.bf16.gmra.mrb[0].mxu0 %v90
  %v216 = vpop.f32.mrb[0].mxu0
  %v217 = vadd.f32 %v52, %v216
  %v218 = vpop.f32.mrb[0].mxu0
  %v219 = vpop.f32.mrb[0].mxu0
  %v220 = vadd.f32 %v52, %v219
  %v221 = vpop.f32.mrb[0].mxu0
  %222 = vmatprep.mubr.bf16.mxu0 0
  %223 = vmatmul.mubr.bf16.gmra.mrb[0].mxu0 %v91
  %v224 = vpop.f32.mrb[0].mxu0
  %v225 = vadd.f32 %v52, %v224
  %v226 = vpop.f32.mrb[0].mxu0
  %v227 = vpop.f32.mrb[0].mxu0
  %v228 = vadd.f32 %v52, %v227
  %v229 = vpop.f32.mrb[0].mxu0
  %230 = vmatprep.mubr.bf16.mxu0 0
  %231 = vmatmul.mubr.bf16.gmra.mrb[0].mxu0 %v92
  %v232 = vpop.f32.mrb[0].mxu0
  %v233 = vadd.f32 %v52, %v232
  %v234 = vpop.f32.mrb[0].mxu0
  %v235 = vpop.f32.mrb[0].mxu0
  %v236 = vadd.f32 %v52, %v235
  %v237 = vpop.f32.mrb[0].mxu0
  %238 = vmatprep.mubr.bf16.mxu0 0
  %239 = vmatmul.mubr.bf16.gmra.mrb[0].mxu0 %v93
  %v240 = vpop.f32.mrb[0].mxu0
  %v241 = vadd.f32 %v52, %v240
  %v242 = vpop.f32.mrb[0].mxu0
  %v243 = vpop.f32.mrb[0].mxu0
  %v244 = vadd.f32 %v52, %v243
  %v245 = vpop.f32.mrb[0].mxu0
  %246 = vdwg.mxu0
  %247 = vst [vmem:[%s3] sm:$0xff] %v185
  %248 = vst [vmem:[%s3 + $0x8] sm:$0xff] %v188
  %249 = vst [vmem:[%s3 + $0x10] sm:$0xff] %v193
  %250 = vst [vmem:[%s3 + $0x18] sm:$0xff] %v196
  %251 = vst [vmem:[%s3 + $0x20] sm:$0xff] %v201
  %252 = vst [vmem:[%s3 + $0x28] sm:$0xff] %v204
  %253 = vst [vmem:[%s3 + $0x30] sm:$0xff] %v209
  %254 = vst [vmem:[%s3 + $0x38] sm:$0xff] %v212
  %255 = vst [vmem:[%s3 + $0x40] sm:$0xff] %v217
  %256 = vst [vmem:[%s3 + $0x48] sm:$0xff] %v220
  %257 = vst [vmem:[%s3 + $0x50] sm:$0xff] %v225
  %258 = vst [vmem:[%s3 + $0x58] sm:$0xff] %v228
  %259 = vst [vmem:[%s3 + $0x60] sm:$0xff] %v233
  %260 = vst [vmem:[%s3 + $0x68] sm:$0xff] %v236
  %261 = vst [vmem:[%s3 + $0x70] sm:$0xff] %v241
  %262 = vst [vmem:[%s3 + $0x78] sm:$0xff] %v244
  // Predicated region
  $region14: #{sequence_wise_linear.1} parent=0 // pred_check
    _
  $region15: #{sequence_wise_linear.1} parent=0 // pred_check_branch
    %264 = sbr.rel (0) target = $region17
  $region16: #{sequence_wise_linear.1} parent=0 // pred_region
    _
  $region17: #{sequence_wise_linear.1} parent=0 // pred_fallthru
    _
  // Predicated region
  $region18: #{sequence_wise_linear.1} parent=0 // pred_check
    _
  $region19: #{sequence_wise_linear.1} parent=0 // pred_check_branch
    %266 = sbr.rel (0) target = $region21
  $region20: #{sequence_wise_linear.1} parent=0 // pred_region
    _
  $region21: #{sequence_wise_linear.1} parent=0 // pred_fallthru
    _

</llo_original>
